<compile_context>
chip_gen: v7x
topology: tpu7x:2x2x1
jax: 0.10.0
libtpu: 0.0.40
codegen_flags: <defaults>
</compile_context>

<pallas_src>
import functools

import jax
import jax.numpy as jnp
from jax.experimental import pallas as pl
from jax.experimental.pallas import tpu as pltpu

_LANE = 128
_SUBLANE = 8
_MAX_TILE_ROWS = 2048  # (2048, 128) f32 = 1 MiB per streamed buffer


def _update_kernel(lr_ref, p_ref, g_ref, o_ref):
    """o = p - lr * g   (elementwise, f32).  lr is a (1, 1) SMEM scalar."""
    o_ref[...] = p_ref[...] - lr_ref[0, 0] * g_ref[...]


def _build_saxpy_call(rows, block_rows):
    """pallas_call for a (rows, 128) f32 SAXPY, in-place on the param operand."""
    grid = (rows // block_rows,)
    return pl.pallas_call(
        _update_kernel,
        out_shape=jax.ShapeDtypeStruct((rows, _LANE), jnp.float32),
        grid_spec=pltpu.PrefetchScalarGridSpec(
            num_scalar_prefetch=0,
            grid=grid,
            in_specs=[
                pl.BlockSpec(memory_space=pltpu.MemorySpace.SMEM),    # lr (1,1)
                pl.BlockSpec((block_rows, _LANE), lambda i: (i, 0)),  # param tile
                pl.BlockSpec((block_rows, _LANE), lambda i: (i, 0)),  # grad tile
            ],
            out_specs=pl.BlockSpec((block_rows, _LANE), lambda i: (i, 0)),
        ),
        input_output_aliases={1: 0},  # param -> output, in-place on HBM
        compiler_params=pltpu.CompilerParams(
            # Pure mem-bound elementwise; "parallel" lets v7x shard the grid
            # axis across both TensorCores to feed its 3.2 TB/s HBM.
            dimension_semantics=("parallel",),
        ),
    )


@functools.partial(jax.jit, static_argnames=("block_rows",), donate_argnums=(0,))
def _packed_update(packed, lr_scalar, *grads, block_rows):
    """One device dispatch: pack gradients + fused Pallas SAXPY on the packed
    parameter buffer.  `packed` is donated and aliased to the output."""
    rows, lanes = packed.shape
    flats = [jnp.asarray(g, jnp.float32).reshape(-1) for g in grads]
    gflat = jnp.concatenate(flats) if flats else jnp.zeros((0,), jnp.float32)
    pad = rows * lanes - int(gflat.size)
    if pad:
        gflat = jnp.pad(gflat, (0, pad))  # padded tail stays 0 (0 - lr*0 = 0)
    g2d = gflat.reshape(rows, lanes)
    return _build_saxpy_call(rows, block_rows)(lr_scalar, packed, g2d)


def _padded_layout(n_elems):
    """Return (total_rows, block_rows) for n_elems f32 elements packed (rows, 128)."""
    rows = max(_SUBLANE, -(-max(n_elems, 1) // _LANE))
    rows = -(-rows // _SUBLANE) * _SUBLANE               # multiple of 8 sublanes
    if rows <= _MAX_TILE_ROWS:
        return rows, rows                                # single full-array block
    rows = -(-rows // _MAX_TILE_ROWS) * _MAX_TILE_ROWS   # multiple of the big tile
    return rows, _MAX_TILE_ROWS


def _to_padded_2d(flat):
    """Zero-pad a 1-D f32 array and view it as (rows, 128)."""
    n = int(flat.size)
    rows, block_rows = _padded_layout(n)
    pad = rows * _LANE - n
    if pad:
        flat = jnp.pad(flat, (0, pad))
    return flat.reshape(rows, _LANE), block_rows


class BaseModelJax:
    """JAX port of BaseModel: parameter bookkeeping + a single fused Pallas
    SAXPY kernel for the meta-learning inner update.

    All parameters are stored persistently in one padded (rows, 128) f32 buffer
    (`self._packed`); per-name views are sliced out lazily.  `update_params`
    packs the incoming gradients and runs the Pallas kernel in one jitted
    dispatch, updating the packed buffer in place via input/output aliasing.

    forward() is abstract in the reference module, so it stays unimplemented.
    """

    def __init__(self):
        self.best_loss = 0
        self._names = []      # ordered parameter names
        self._shapes = {}     # name -> tuple shape
        self._offsets = {}    # name -> start offset (elements) in the flat buffer
        self._sizes = {}      # name -> number of elements
        self._total = 0       # total unpadded element count
        self._packed = None   # (rows, 128) f32 padded buffer (source of truth)
        self._block_rows = None

    # --- parameter bookkeeping (mirrors named_params / set_param / params) ---
    def _rebuild(self, current):
        offset = 0
        flats = []
        for n in self._names:
            a = jnp.asarray(current[n], jnp.float32)
            self._shapes[n] = a.shape
            self._offsets[n] = offset
            self._sizes[n] = int(a.size)
            offset += int(a.size)
            flats.append(a.reshape(-1))
        self._total = offset
        flat = jnp.concatenate(flats) if flats else jnp.zeros((0,), jnp.float32)
        self._packed, self._block_rows = _to_padded_2d(flat)

    def set_param(self, name, value):
        value = jnp.asarray(value, jnp.float32)
        registered = name in self._shapes
        if registered and value.shape == self._shapes[name] and self._packed is not None:
            # Same-shape overwrite: write into the packed buffer in place.
            flat = self._packed.reshape(-1)
            flat = jax.lax.dynamic_update_slice(
                flat, value.reshape(-1), (self._offsets[name],))
            self._packed = flat.reshape(self._packed.shape)
            return
        if not registered:
            self._names.append(name)
        current = {}
        for n in self._names:
            current[n] = value if n == name else self.get_param(n)
        self._shapes[name] = value.shape
        self._rebuild(current)

    def get_param(self, name):
        flat = self._packed.reshape(-1)
        off, size = self._offsets[name], self._sizes[name]
        return flat[off:off + size].reshape(self._shapes[name])

    def named_params(self):
        for name in self._names:
            yield name, self.get_param(name)

    def params(self):
        for _, p in self.named_params():
            yield p

    def count_params(self):
        n = sum(self._sizes[name] for name in self._names)
        return n, n  # all params "trainable"

    # --- the meta-learning inner update: params <- params - lr_inner * grads ---
    def update_params(self, lr_inner, source_params, first_order=False):
        """source_params: iterable of gradients, same order as named_params()."""
        # TODO(synk): the torch `param.grad` path (source_params=None) and the
        # detach/first_order autograd bookkeeping have no JAX equivalent here;
        # only the explicit-gradient path carries tensor math.
        del first_order
        grads = [jnp.asarray(g, jnp.float32) for g in source_params]
        n_grad = sum(int(g.size) for g in grads)
        assert n_grad == self._total, "gradient count/shape mismatch"
        lr = jnp.full((1, 1), lr_inner, dtype=jnp.float32)
        # Single jitted dispatch: gradient packing + one fused Pallas kernel.
        # The packed param buffer is updated in place (donated + aliased).
        self._packed = _packed_update(
            self._packed, lr, *grads, block_rows=self._block_rows)

    def forward(self, x):
        # TODO(synk): abstract in the PyTorch reference; no concrete forward exists.
        raise NotImplementedError("BaseModel.forward is abstract.")


if __name__ == "__main__":
    key = jax.random.PRNGKey(0)
    k_w, k_b, k_gw, k_gb = jax.random.split(key, 4)

    # Deterministic synthetic parameters (one small linear layer worth of
    # weights, since BaseModel itself declares none) and matching "gradients".
    weight = jax.random.normal(k_w, (32, 16), dtype=jnp.float32)
    bias = jax.random.normal(k_b, (32,), dtype=jnp.float32)
    grad_w = jax.random.normal(k_gw, (32, 16), dtype=jnp.float32)
    grad_b = jax.random.normal(k_gb, (32,), dtype=jnp.float32)

    model = BaseModelJax()
    model.set_param("fc.weight", weight)
    model.set_param("fc.bias", bias)

    lr_inner = 0.1
    model.update_params(lr_inner, source_params=[grad_w, grad_b])

    new_w = jax.block_until_ready(model.get_param("fc.weight"))
    new_b = jax.block_until_ready(model.get_param("fc.bias"))

    # Reference check against plain JAX.
    ref_w = weight - lr_inner * grad_w
    ref_b = bias - lr_inner * grad_b
    assert new_w.shape == (32, 16) and new_w.dtype == jnp.float32
    assert new_b.shape == (32,) and new_b.dtype == jnp.float32
    assert jnp.allclose(new_w, ref_w, atol=1e-6, rtol=1e-6)
    assert jnp.allclose(new_b, ref_b, atol=1e-6, rtol=1e-6)
    assert model.count_params() == (32 * 16 + 32, 32 * 16 + 32)

    # Second update to exercise the persistent packed buffer / in-place alias path.
    model.update_params(lr_inner, source_params=[grad_w, grad_b])
    new_w2 = jax.block_until_ready(model.get_param("fc.weight"))
    assert jnp.allclose(new_w2, weight - 2 * lr_inner * grad_w, atol=1e-6, rtol=1e-6)

    print("KERNEL_OK")
</pallas_src>

<mosaic_0001>
module attributes {stable_mosaic.version = 11 : i64} {
  func.func @_update_kernel(%arg0: i32, %arg1: memref<1x1xf32, #tpu.memory_space<smem>>, %arg2: memref<8x128xf32, #tpu.memory_space<vmem>>, %arg3: memref<8x128xf32, #tpu.memory_space<vmem>>, %arg4: memref<8x128xf32, #tpu.memory_space<vmem>>) attributes {dimension_semantics = [#tpu.dimension_semantics<parallel>], iteration_bounds = array<i64: 1>, scalar_prefetch = 0 : i64, scratch_operands = 0 : i64, tpu.core_type = #tpu.core_type<tc>, window_params = [{transform_indices = @transform_0, window_bounds = array<i64: 1, 1>}, {transform_indices = @transform_1, window_bounds = array<i64: 8, 128>}, {transform_indices = @transform_2, window_bounds = array<i64: 8, 128>}, {transform_indices = @transform_3, window_bounds = array<i64: 8, 128>}]} {
    %c0 = arith.constant 0 : index
    %c0_0 = arith.constant 0 : index
    %0 = vector.load %arg2[%c0, %c0_0] : memref<8x128xf32, #tpu.memory_space<vmem>>, vector<8x128xf32>
    %c0_1 = arith.constant 0 : index
    %c0_2 = arith.constant 0 : index
    %1 = memref.load %arg1[%c0_1, %c0_2] : memref<1x1xf32, #tpu.memory_space<smem>>
    %c0_3 = arith.constant 0 : index
    %c0_4 = arith.constant 0 : index
    %2 = vector.load %arg3[%c0_3, %c0_4] : memref<8x128xf32, #tpu.memory_space<vmem>>, vector<8x128xf32>
    %3 = vector.broadcast %1 : f32 to vector<8x128xf32>
    %4 = arith.mulf %3, %2 : vector<8x128xf32>
    %5 = arith.subf %0, %4 : vector<8x128xf32>
    %c0_5 = arith.constant 0 : index
    %c0_6 = arith.constant 0 : index
    %6 = vector.load %arg4[%c0_5, %c0_6] : memref<8x128xf32, #tpu.memory_space<vmem>>, vector<8x128xf32>
    tpu.vector_store %arg4[%c0_5, %c0_6], %5 {strides = array<i32>} : memref<8x128xf32, #tpu.memory_space<vmem>>, vector<8x128xf32>,
    return
  }
  func.func @transform_0(%arg0: i32) -> (i32, i32) {
    %c0_i32 = arith.constant 0 : i32
    %c0_i32_0 = arith.constant 0 : i32
    %c0_i32_1 = arith.constant 0 : i32
    return %c0_i32, %c0_i32_0 : i32, i32
  }
  func.func @transform_1(%arg0: i32) -> (i32, i32) {
    %c0_i32 = arith.constant 0 : i32
    %c0_i32_0 = arith.constant 0 : i32
    return %arg0, %c0_i32 : i32, i32
  }
  func.func @transform_2(%arg0: i32) -> (i32, i32) {
    %c0_i32 = arith.constant 0 : i32
    %c0_i32_0 = arith.constant 0 : i32
    return %arg0, %c0_i32 : i32, i32
  }
  func.func @transform_3(%arg0: i32) -> (i32, i32) {
    %c0_i32 = arith.constant 0 : i32
    %c0_i32_0 = arith.constant 0 : i32
    return %arg0, %c0_i32 : i32, i32
  }
}

</mosaic_0001>

<llo_original>
// kernel: _packed_update.1
$region0: #{_packed_update.1}
  #allocation0 [shape = 'u32[]', space=smem, size = 0x4, offset = 0x4, fixed_abs, tag = 'smem constant byte address 0x4 - core index']
  #allocation1 [shape = 'u32[144,128]{1,0:T(1,128)}', space=vmem, size = 0x12000, scoped, tag = 'internal scratch']
  #allocation2 [shape = 'f32[1,1]{1,0:T(1,128)S(6)}', space=smem, size = 0x200, scoped, tag = 'scoped memory for _packed_update.1']
  %s0 = inlined_call_operand.<no memory space> [shape: f32[1,1], index: 0, kind: input, shape index: {}]
  %s1 = inlined_call_operand.hbm [shape: f32[8,128], index: 1, kind: input, shape index: {}, may-alias: {1,3}]
  %s2 = inlined_call_operand.vmem [shape: f32[8,128], index: 2, kind: input, shape index: {}]
  %s3 = inlined_call_operand.hbm [shape: f32[8,128], index: 3, kind: output, shape index: {}, may-alias: {1,3}]
  %s4 = sld [smem:[#allocation0]]
  $region26: #{_packed_update.1} parent=0
    _
  %s6 = ssub.s32 1, %s4
  %s7 = scalar_select 0, %s6, %s4
  %8 = sst [smem:[#allocation2]] %s0
  $region1: #{_packed_update.1} parent=0
    #allocation3 [shape = 'u8[4096]{0}', space=vmem, size = 0x1000, scoped, tag = 'input window, operand 1, single buffered']
    #allocation4 [shape = 's32[1]{0}', space=sflag, size = 0x4, scoped, tag = 'scoped memory for _packed_update.1']
    #allocation5 [shape = 's32[1]{0}', space=sflag, size = 0x4, scoped, tag = 'scoped memory for _packed_update.1']
    #allocation6 [shape = 'u8[4096]{0}', space=vmem, size = 0x1000, scoped, tag = 'output window, operand 0, single buffered']
    %9 = vsyncpa [#allocation4], 0
    %10 = vsyncpa [#allocation5], 0
    // Predicated region
    $region2: #{_packed_update.1} parent=1 // pred_check
      _
    $region3: #{_packed_update.1} parent=1 // pred_check_branch
      %12 = sbr.rel (0) target = $region5
    $region4: #{_packed_update.1} parent=1 // pred_region
      _
    $region5: #{_packed_update.1} parent=1 // pred_fallthru
      _
    // Predicated region
    $region6: #{_packed_update.1} parent=1 // pred_check
      _
    $region7: #{_packed_update.1} parent=1 // pred_check_branch
      %14 = sbr.rel (0) target = $region9
    $region8: #{_packed_update.1} parent=1 // pred_region
      %s16 = ssub.s32 128, 128
      %17 = vsyncadd [#allocation4], %s16
      %s19 = sshll.u32 [#allocation3], 4
      %s20 = int_to_ptr.vmem [resolvable:$true] %s19
      %22 = dma.hbm_to_vmem [thread:$0]  %s1, 128, %s20, [#allocation4]
    $region9: #{_packed_update.1} parent=1 // pred_fallthru
      _
    // Predicated region
    $region10: #{_packed_update.1} parent=1 // pred_check
      _
    $region11: #{_packed_update.1} parent=1 // pred_check_branch
      %24 = sbr.rel (0) target = $region13
    $region12: #{_packed_update.1} parent=1 // pred_region
      _
    $region13: #{_packed_update.1} parent=1 // pred_fallthru
      _
    // Predicated region
    $region14: #{_packed_update.1} parent=1 // pred_check
      _
    $region15: #{_packed_update.1} parent=1 // pred_check_branch
      %26 = sbr.rel (0) target = $region17
    $region16: #{_packed_update.1} parent=1 // pred_region
      %27 = dma.done [#allocation4], 128
    $region17: #{_packed_update.1} parent=1 // pred_fallthru
      _
    %v28 = vld [vmem:[#allocation3] sm:$0xff]
    %s29 = sld [smem:[#allocation2]]
    %v30 = vld [vmem:[%s2] sm:$0xff]
    %v31 = vstv %s29
    %v32 = vmul.f32 %v31, %v30
    %v33 = vsub.f32 %v28, %v32
    %34 = vst [vmem:[#allocation6] sm:$0xff] %v33
    // Predicated region
    $region18: #{_packed_update.1} parent=1 // pred_check
      _
    $region19: #{_packed_update.1} parent=1 // pred_check_branch
      %36 = sbr.rel (0) target = $region21
    $region20: #{_packed_update.1} parent=1 // pred_region
      %s38 = ssub.s32 128, 128
      %39 = vsyncadd [#allocation5], %s38
      %s41 = sshll.u32 [#allocation6], 4
      %s42 = int_to_ptr.vmem [resolvable:$true] %s41
      %44 = dma.vmem_to_hbm [thread:$0]  %s42, 128, %s3, [#allocation5]
    $region21: #{_packed_update.1} parent=1 // pred_fallthru
      _
    // Predicated region
    $region22: #{_packed_update.1} parent=1 // pred_check
      _
    $region23: #{_packed_update.1} parent=1 // pred_check_branch
      %46 = sbr.rel (0) target = $region25
    $region24: #{_packed_update.1} parent=1 // pred_region
      %47 = dma.done [#allocation5], 128
    $region25: #{_packed_update.1} parent=1 // pred_fallthru
      _
    %48 = vsyncpa [#allocation4], 1
    %49 = vsyncpa [#allocation5], 1

</llo_original>
